<compile_context>
chip_gen: v7x
topology: tpu7x:2x2x1
jax: 0.10.0
libtpu: 0.0.40
codegen_flags: <defaults>
</compile_context>

<pallas_src>
import functools

import jax
import jax.numpy as jnp
from jax import lax
from jax.experimental import pallas as pl
from jax.experimental.pallas import tpu as pltpu


# ------------------------------ fused kernel --------------------------------

def _gcn_forward_kernel(x_ref, ei_ref, batch_ref,
                        w1t_ref, b1_ref, w2t_ref, b2_ref,
                        wfct_ref, bfc_ref,
                        out_ref, *, n_nodes, n_edges, n_graphs):
    """Whole modelGcn forward in a single kernel.

    x_ref:     (N, F)      node features (f32)
    ei_ref:    (2, E)      edge_index (int32), row0 = src, row1 = dst
    batch_ref: (1, N)      graph id per node (int32)
    w1t_ref:   (F, F)      gcn_conv1 weight, pre-transposed (x @ W.T)
    b1_ref:    (1, F)
    w2t_ref:   (F, 2F), b2_ref: (1, 2F)
    wfct_ref:  (2F, n_out), bfc_ref: (1, n_out)
    out_ref:   (G, n_out)  per-graph fc output (view(1,-1) done in wrapper)
    """
    f32 = jnp.float32
    x = x_ref[...]                                            # (N, F)

    # ---- dense normalized adjacency:  A_hat = D^-1/2 (A + I) D^-1/2 --------
    src = ei_ref[0:1, :]                                      # (1, E)
    dst = ei_ref[1:2, :]                                      # (1, E)
    node_iota = lax.broadcasted_iota(jnp.int32, (n_nodes, n_edges), 0)
    src_oh = (node_iota == src).astype(f32)                   # (N, E)
    dst_oh = (node_oh := dst, node_iota == dst)[1].astype(f32)  # (N, E)
    # a[i, j] = number of edges j -> i   (single MXU matmul, contract over E)
    a = lax.dot_general(dst_oh, src_oh, (((1,), (1,)), ((), ())),
                        preferred_element_type=f32)           # (N, N)
    row_i = lax.broadcasted_iota(jnp.int32, (n_nodes, n_nodes), 0)
    col_i = lax.broadcasted_iota(jnp.int32, (n_nodes, n_nodes), 1)
    a = a + (row_i == col_i).astype(f32)                      # add self loops
    deg = jnp.sum(a, axis=1, keepdims=True)                   # (N, 1) in-deg + 1
    dinv = 1.0 / jnp.sqrt(deg)                                # (N, 1), deg >= 1

    def gcn_conv(h, wt_ref, b_ref):
        # out[i] = dinv[i] * sum_j A[i,j] * dinv[j] * (h W^T)[j]  + b
        hp = jnp.dot(h, wt_ref[...], preferred_element_type=f32)
        agg = jnp.dot(a, hp * dinv, preferred_element_type=f32)
        return agg * dinv + b_ref[...]

    h1 = jnp.maximum(gcn_conv(x, w1t_ref, b1_ref), 0.0)       # (N, F)   relu
    h2 = jnp.maximum(gcn_conv(h1, w2t_ref, b2_ref), 0.0)      # (N, 2F)  relu

    # ---- global mean pool (gap) over the `batch` assignment -----------------
    batch_ids = batch_ref[...]                                # (1, N)
    g_iota = lax.broadcasted_iota(jnp.int32, (n_graphs, n_nodes), 0)
    pool = (g_iota == batch_ids).astype(f32)                  # (G, N)
    counts = jnp.maximum(jnp.sum(pool, axis=1, keepdims=True), 1.0)  # (G, 1)
    gc = jnp.dot(pool, h2, preferred_element_type=f32) / counts      # (G, 2F)

    # nn.Dropout -> identity (eval mode / deterministic forward).
    # ---- fc ---------------------------------------------------------------
    out_ref[...] = (jnp.dot(gc, wfct_ref[...], preferred_element_type=f32)
                    + bfc_ref[...])                           # (G, n_out)


# ------------------------------ wrapper --------------------------------------

def model_forward(x, edge_index, batch, params, n_graphs):
    n_nodes, feat = x.shape
    n_edges = edge_index.shape[1]
    n_out = params["fc_w"].shape[0]

    kernel = functools.partial(_gcn_forward_kernel, n_nodes=n_nodes,
                               n_edges=n_edges, n_graphs=n_graphs)

    args = (x.astype(jnp.float32),
            edge_index.astype(jnp.int32),
            batch.reshape(1, -1).astype(jnp.int32),
            params["w1"].T, params["b1"].reshape(1, -1),
            params["w2"].T, params["b2"].reshape(1, -1),
            params["fc_w"].T, params["fc_b"].reshape(1, -1))

    flops = (2 * n_nodes * n_nodes * n_edges                    # adjacency build
             + 2 * n_nodes * feat * feat                        # conv1 lin
             + 2 * n_nodes * n_nodes * feat                     # conv1 aggregate
             + 2 * n_nodes * feat * (2 * feat)                  # conv2 lin
             + 2 * n_nodes * n_nodes * (2 * feat)               # conv2 aggregate
             + 2 * n_graphs * n_nodes * (2 * feat)              # mean pool
             + 2 * n_graphs * (2 * feat) * n_out)               # fc
    bytes_accessed = (sum(int(a.size) * a.dtype.itemsize for a in args)
                      + n_graphs * n_out * 4)

    vmem = pl.BlockSpec(memory_space=pltpu.MemorySpace.VMEM)
    gc_out = pl.pallas_call(
        kernel,
        out_shape=jax.ShapeDtypeStruct((n_graphs, n_out), jnp.float32),
        in_specs=[vmem] * len(args),
        out_specs=vmem,
        cost_estimate=pl.CostEstimate(flops=flops,
                                      transcendentals=n_nodes,
                                      bytes_accessed=bytes_accessed),
        compiler_params=pltpu.CompilerParams(
            vmem_limit_bytes=16 * 1024 * 1024),
    )(*args)
    return gc_out.reshape(1, -1)       # PyTorch .view(1, -1); metadata-only


# --------------------------- pure-JAX reference ------------------------------

def reference_forward(x, edge_index, batch, params, n_graphs):
    n_nodes = x.shape[0]
    prec = lax.Precision.HIGHEST

    def gcn_conv(h, w, b):
        loop = jnp.arange(n_nodes, dtype=edge_index.dtype)
        src = jnp.concatenate([edge_index[0], loop])
        dst = jnp.concatenate([edge_index[1], loop])
        ones = jnp.ones(src.shape[0], jnp.float32)
        deg = jnp.zeros((n_nodes,), jnp.float32).at[dst].add(ones)
        dinv = 1.0 / jnp.sqrt(deg)
        norm = dinv[src] * dinv[dst]
        hp = jnp.dot(h, w.T, precision=prec)
        msg = norm[:, None] * hp[src]
        agg = jnp.zeros((n_nodes, hp.shape[1]), jnp.float32).at[dst].add(msg)
        return agg + b

    h1 = jax.nn.relu(gcn_conv(x, params["w1"], params["b1"]))
    h2 = jax.nn.relu(gcn_conv(h1, params["w2"], params["b2"]))
    sums = jnp.zeros((n_graphs, h2.shape[1]), jnp.float32).at[batch].add(h2)
    cnts = jnp.zeros((n_graphs,), jnp.float32).at[batch].add(1.0)
    gc = sums / jnp.maximum(cnts, 1.0)[:, None]
    out = jnp.dot(gc, params["fc_w"].T, precision=prec) + params["fc_b"]
    return out.reshape(1, -1)


# ---------------------------------- main -------------------------------------

if __name__ == "__main__":
    num_features = 16          # node feature dim == GCN channels
    n_output = 1
    n_graphs = 2
    nodes_per_graph = 6
    n_nodes = n_graphs * nodes_per_graph

    # deterministic small batch of graphs: undirected ring + one chord each
    src_list, dst_list = [], []
    for g in range(n_graphs):
        off = g * nodes_per_graph
        for i in range(nodes_per_graph):
            u_n, v_n = off + i, off + (i + 1) % nodes_per_graph
            src_list += [u_n, v_n]
            dst_list += [v_n, u_n]
        u_n, v_n = off + 0, off + 3          # chord
        src_list += [u_n, v_n]
        dst_list += [v_n, u_n]
    edge_index = jnp.array([src_list, dst_list], dtype=jnp.int32)   # (2, E)
    batch = jnp.repeat(jnp.arange(n_graphs, dtype=jnp.int32), nodes_per_graph)

    key = jax.random.PRNGKey(0)
    kx, k1, k2, k3, k4, k5, k6 = jax.random.split(key, 7)
    x = jax.random.normal(kx, (n_nodes, num_features), jnp.float32)

    def u(k, shape):
        return jax.random.uniform(k, shape, jnp.float32, -0.5, 0.5)

    params = {
        "w1": u(k1, (num_features, num_features)),        # GCNConv(F, F)
        "b1": u(k2, (num_features,)),
        "w2": u(k3, (2 * num_features, num_features)),    # GCNConv(F, 2F)
        "b2": u(k4, (2 * num_features,)),
        "fc_w": u(k5, (n_output, 2 * num_features)),      # Linear(2F, n_output)
        "fc_b": u(k6, (n_output,)),
    }

    out = model_forward(x, edge_index, batch, params, n_graphs)
    out = jax.block_until_ready(out)

    ref = reference_forward(x, edge_index, batch, params, n_graphs)
    assert out.shape == (1, n_graphs * n_output), out.shape
    assert jnp.allclose(out, ref, atol=1e-3, rtol=1e-3), (out, ref)

    print("KERNEL_OK")
</pallas_src>

<mosaic_0001>
module attributes {stable_mosaic.version = 11 : i64} {
  func.func @_gcn_forward_kernel(%arg0: memref<12x16xf32, #tpu.memory_space<vmem>>, %arg1: memref<2x28xi32, #tpu.memory_space<vmem>>, %arg2: memref<1x12xi32, #tpu.memory_space<vmem>>, %arg3: memref<16x16xf32, #tpu.memory_space<vmem>>, %arg4: memref<1x16xf32, #tpu.memory_space<vmem>>, %arg5: memref<16x32xf32, #tpu.memory_space<vmem>>, %arg6: memref<1x32xf32, #tpu.memory_space<vmem>>, %arg7: memref<32x1xf32, #tpu.memory_space<vmem>>, %arg8: memref<1x1xf32, #tpu.memory_space<vmem>>, %arg9: memref<2x1xf32, #tpu.memory_space<vmem>>) attributes {dimension_semantics = [], scalar_prefetch = 0 : i64, scratch_operands = 0 : i64, tpu.core_type = #tpu.core_type<tc>} {
    %c0 = arith.constant 0 : index
    %c0_0 = arith.constant 0 : index
    %0 = vector.load %arg0[%c0, %c0_0] : memref<12x16xf32, #tpu.memory_space<vmem>>, vector<12x16xf32>
    %c0_1 = arith.constant 0 : index
    %c0_2 = arith.constant 0 : index
    %1 = vector.load %arg1[%c0_1, %c0_2] : memref<2x28xi32, #tpu.memory_space<vmem>>, vector<1x28xi32>
    %c1 = arith.constant 1 : index
    %c0_3 = arith.constant 0 : index
    %2 = vector.load %arg1[%c1, %c0_3] : memref<2x28xi32, #tpu.memory_space<vmem>>, vector<1x28xi32>
    %3 = tpu.iota {dimensions = array<i32: 0>} : vector<12x28xi32>
    %4 = vector.broadcast %1 : vector<1x28xi32> to vector<12x28xi32>
    %5 = arith.cmpi eq, %3, %4 : vector<12x28xi32>
    %6 = arith.extui %5 : vector<12x28xi1> to vector<12x28xi32>
    %7 = arith.sitofp %6 : vector<12x28xi32> to vector<12x28xf32>
    %8 = vector.broadcast %2 : vector<1x28xi32> to vector<12x28xi32>
    %9 = arith.cmpi eq, %3, %8 : vector<12x28xi32>
    %10 = arith.extui %9 : vector<12x28xi1> to vector<12x28xi32>
    %11 = arith.sitofp %10 : vector<12x28xi32> to vector<12x28xf32>
    %cst = arith.constant dense<0.000000e+00> : vector<12x12xf32>
    %12 = tpu.matmul %11, %7, %cst {dimension_numbers = #tpu.dot_dimension_numbers<[1], [1], [0], [0], [0, 0, 1, 0], [], []>} : vector<12x28xf32>, vector<12x28xf32>, vector<12x12xf32> -> vector<12x12xf32>
    %13 = tpu.iota {dimensions = array<i32: 0>} : vector<12x12xi32>
    %14 = tpu.iota {dimensions = array<i32: 1>} : vector<12x12xi32>
    %15 = arith.cmpi eq, %13, %14 : vector<12x12xi32>
    %16 = arith.extui %15 : vector<12x12xi1> to vector<12x12xi32>
    %17 = arith.sitofp %16 : vector<12x12xi32> to vector<12x12xf32>
    %18 = arith.addf %12, %17 : vector<12x12xf32>
    %cst_4 = arith.constant dense<0.000000e+00> : vector<12xf32>
    %19 = vector.multi_reduction <add>, %18, %cst_4 [1] : vector<12x12xf32> to vector<12xf32>
    %20 = vector.shape_cast %19 : vector<12xf32> to vector<12x1xf32>
    %21 = math.sqrt %20 : vector<12x1xf32>
    %cst_5 = arith.constant 1.000000e+00 : f32
    %22 = vector.broadcast %cst_5 : f32 to vector<12x1xf32>
    %23 = arith.divf %22, %21 : vector<12x1xf32>
    %c0_6 = arith.constant 0 : index
    %c0_7 = arith.constant 0 : index
    %24 = vector.load %arg3[%c0_6, %c0_7] : memref<16x16xf32, #tpu.memory_space<vmem>>, vector<16x16xf32>
    %cst_8 = arith.constant dense<0.000000e+00> : vector<12x16xf32>
    %25 = tpu.matmul %0, %24, %cst_8 {dimension_numbers = #tpu.dot_dimension_numbers<[1], [0], [0], [1], [0, 0, 1, 1], [], []>} : vector<12x16xf32>, vector<16x16xf32>, vector<12x16xf32> -> vector<12x16xf32>
    %26 = vector.broadcast %23 : vector<12x1xf32> to vector<12x16xf32>
    %27 = arith.mulf %25, %26 : vector<12x16xf32>
    %cst_9 = arith.constant dense<0.000000e+00> : vector<12x16xf32>
    %28 = tpu.matmul %18, %27, %cst_9 {dimension_numbers = #tpu.dot_dimension_numbers<[1], [0], [0], [1], [0, 0, 1, 1], [], []>} : vector<12x12xf32>, vector<12x16xf32>, vector<12x16xf32> -> vector<12x16xf32>
    %29 = vector.broadcast %23 : vector<12x1xf32> to vector<12x16xf32>
    %30 = arith.mulf %28, %29 : vector<12x16xf32>
    %c0_10 = arith.constant 0 : index
    %c0_11 = arith.constant 0 : index
    %31 = vector.load %arg4[%c0_10, %c0_11] : memref<1x16xf32, #tpu.memory_space<vmem>>, vector<1x16xf32>
    %32 = vector.broadcast %31 : vector<1x16xf32> to vector<12x16xf32>
    %33 = arith.addf %30, %32 : vector<12x16xf32>
    %cst_12 = arith.constant 0.000000e+00 : f32
    %34 = vector.broadcast %cst_12 : f32 to vector<12x16xf32>
    %35 = arith.maximumf %33, %34 : vector<12x16xf32>
    %c0_13 = arith.constant 0 : index
    %c0_14 = arith.constant 0 : index
    %36 = vector.load %arg5[%c0_13, %c0_14] : memref<16x32xf32, #tpu.memory_space<vmem>>, vector<16x32xf32>
    %cst_15 = arith.constant dense<0.000000e+00> : vector<12x32xf32>
    %37 = tpu.matmul %35, %36, %cst_15 {dimension_numbers = #tpu.dot_dimension_numbers<[1], [0], [0], [1], [0, 0, 1, 1], [], []>} : vector<12x16xf32>, vector<16x32xf32>, vector<12x32xf32> -> vector<12x32xf32>
    %38 = vector.broadcast %23 : vector<12x1xf32> to vector<12x32xf32>
    %39 = arith.mulf %37, %38 : vector<12x32xf32>
    %cst_16 = arith.constant dense<0.000000e+00> : vector<12x32xf32>
    %40 = tpu.matmul %18, %39, %cst_16 {dimension_numbers = #tpu.dot_dimension_numbers<[1], [0], [0], [1], [0, 0, 1, 1], [], []>} : vector<12x12xf32>, vector<12x32xf32>, vector<12x32xf32> -> vector<12x32xf32>
    %41 = vector.broadcast %23 : vector<12x1xf32> to vector<12x32xf32>
    %42 = arith.mulf %40, %41 : vector<12x32xf32>
    %c0_17 = arith.constant 0 : index
    %c0_18 = arith.constant 0 : index
    %43 = vector.load %arg6[%c0_17, %c0_18] : memref<1x32xf32, #tpu.memory_space<vmem>>, vector<1x32xf32>
    %44 = vector.broadcast %43 : vector<1x32xf32> to vector<12x32xf32>
    %45 = arith.addf %42, %44 : vector<12x32xf32>
    %cst_19 = arith.constant 0.000000e+00 : f32
    %46 = vector.broadcast %cst_19 : f32 to vector<12x32xf32>
    %47 = arith.maximumf %45, %46 : vector<12x32xf32>
    %c0_20 = arith.constant 0 : index
    %c0_21 = arith.constant 0 : index
    %48 = vector.load %arg2[%c0_20, %c0_21] : memref<1x12xi32, #tpu.memory_space<vmem>>, vector<1x12xi32>
    %49 = tpu.iota {dimensions = array<i32: 0>} : vector<2x12xi32>
    %50 = vector.broadcast %48 : vector<1x12xi32> to vector<2x12xi32>
    %51 = arith.cmpi eq, %49, %50 : vector<2x12xi32>
    %52 = arith.extui %51 : vector<2x12xi1> to vector<2x12xi32>
    %53 = arith.sitofp %52 : vector<2x12xi32> to vector<2x12xf32>
    %cst_22 = arith.constant dense<0.000000e+00> : vector<2xf32>
    %54 = vector.multi_reduction <add>, %53, %cst_22 [1] : vector<2x12xf32> to vector<2xf32>
    %55 = vector.shape_cast %54 : vector<2xf32> to vector<2x1xf32>
    %cst_23 = arith.constant 1.000000e+00 : f32
    %56 = vector.broadcast %cst_23 : f32 to vector<2x1xf32>
    %57 = arith.maximumf %55, %56 : vector<2x1xf32>
    %cst_24 = arith.constant dense<0.000000e+00> : vector<2x32xf32>
    %58 = tpu.matmul %53, %47, %cst_24 {dimension_numbers = #tpu.dot_dimension_numbers<[1], [0], [0], [1], [0, 0, 1, 1], [], []>} : vector<2x12xf32>, vector<12x32xf32>, vector<2x32xf32> -> vector<2x32xf32>
    %59 = vector.broadcast %57 : vector<2x1xf32> to vector<2x32xf32>
    %60 = arith.divf %58, %59 : vector<2x32xf32>
    %c0_25 = arith.constant 0 : index
    %c0_26 = arith.constant 0 : index
    %61 = vector.load %arg7[%c0_25, %c0_26] : memref<32x1xf32, #tpu.memory_space<vmem>>, vector<32x1xf32>
    %cst_27 = arith.constant dense<0.000000e+00> : vector<2x1xf32>
    %62 = tpu.matmul %60, %61, %cst_27 {dimension_numbers = #tpu.dot_dimension_numbers<[1], [0], [0], [1], [0, 0, 1, 1], [], []>} : vector<2x32xf32>, vector<32x1xf32>, vector<2x1xf32> -> vector<2x1xf32>
    %c0_28 = arith.constant 0 : index
    %c0_29 = arith.constant 0 : index
    %63 = vector.load %arg8[%c0_28, %c0_29] : memref<1x1xf32, #tpu.memory_space<vmem>>, vector<1x1xf32>
    %64 = vector.broadcast %63 : vector<1x1xf32> to vector<2x1xf32>
    %65 = arith.addf %62, %64 : vector<2x1xf32>
    %c0_30 = arith.constant 0 : index
    %c0_31 = arith.constant 0 : index
    %66 = vector.load %arg9[%c0_30, %c0_31] : memref<2x1xf32, #tpu.memory_space<vmem>>, vector<2x1xf32>
    tpu.vector_store %arg9[%c0_30, %c0_31], %65 {strides = array<i32>} : memref<2x1xf32, #tpu.memory_space<vmem>>, vector<2x1xf32>,
    return
  }
}

</mosaic_0001>

<llo_original>
// kernel: tpu_custom_call.1
$region0: #{tpu_custom_call.1}
  #allocation0 [shape = 'u32[]', space=smem, size = 0x4, offset = 0x4, fixed_abs, tag = 'smem constant byte address 0x4 - core index']
  #allocation1 [shape = 'u32[144,128]{1,0:T(1,128)}', space=vmem, size = 0x12000, scoped, tag = 'internal scratch']
  #allocation2 [shape = 'f32[1,1]{1,0:T(1,128)S(1)}', space=vmem, size = 0x200, scoped, tag = 'scoped memory for tpu_custom_call.1']
  %s0 = inlined_call_operand.vmem [shape: f32[12,16], index: 0, kind: input, shape index: {}]
  %s1 = inlined_call_operand.hbm [shape: s32[2,28], index: 1, kind: input, shape index: {}]
  %s2 = inlined_call_operand.hbm [shape: s32[1,12], index: 2, kind: input, shape index: {}]
  %s3 = inlined_call_operand.vmem [shape: f32[16,16], index: 3, kind: input, shape index: {}]
  %s4 = inlined_call_operand.vmem [shape: f32[1,16], index: 4, kind: input, shape index: {}]
  %s5 = inlined_call_operand.vmem [shape: f32[16,32], index: 5, kind: input, shape index: {}]
  %s6 = inlined_call_operand.vmem [shape: f32[1,32], index: 6, kind: input, shape index: {}]
  %s7 = inlined_call_operand.vmem [shape: f32[32,1], index: 7, kind: input, shape index: {}]
  %s8 = inlined_call_operand.<no memory space> [shape: f32[1,1], index: 8, kind: input, shape index: {}]
  %s9 = inlined_call_operand.vmem [shape: f32[2,1], index: 9, kind: output, shape index: {}]
  %s10 = sld [smem:[#allocation0]]
  $region54: #{tpu_custom_call.1} parent=0
    _
  %s12 = ssub.s32 1, %s10
  %s13 = scalar_select 0, %s12, %s10
  %v14 = vstv %s8
  %15 = vst [vmem:[#allocation2] sm:$0x1] %v14
  $region1: #{tpu_custom_call.1} parent=0
    #allocation3 [shape = 'u8[1024]{0}', space=vmem, size = 0x400, scoped, tag = 'input window, operand 1, single buffered']
    #allocation4 [shape = 's32[1]{0}', space=sflag, size = 0x4, scoped, tag = 'scoped memory for tpu_custom_call.1']
    #allocation5 [shape = 'u8[512]{0}', space=vmem, size = 0x400, scoped, tag = 'input window, operand 2, single buffered']
    #allocation6 [shape = 's32[1]{0}', space=sflag, size = 0x4, scoped, tag = 'scoped memory for tpu_custom_call.1']
    %16 = vsyncpa [#allocation4], 0
    %17 = vsyncpa [#allocation6], 0
    // Predicated region
    $region2: #{tpu_custom_call.1} parent=1 // pred_check
      _
    $region3: #{tpu_custom_call.1} parent=1 // pred_check_branch
      %19 = sbr.rel (0) target = $region5
    $region4: #{tpu_custom_call.1} parent=1 // pred_region
      _
    $region5: #{tpu_custom_call.1} parent=1 // pred_fallthru
      _
    // Predicated region
    $region6: #{tpu_custom_call.1} parent=1 // pred_check
      _
    $region7: #{tpu_custom_call.1} parent=1 // pred_check_branch
      %21 = sbr.rel (0) target = $region9
    $region8: #{tpu_custom_call.1} parent=1 // pred_region
      %s23 = ssub.s32 32, 32
      %24 = vsyncadd [#allocation4], %s23
      %s26 = sshll.u32 [#allocation3], 4
      %s27 = int_to_ptr.vmem [resolvable:$true] %s26
      %29 = dma.hbm_to_vmem [thread:$0]  %s1, 32, %s27, [#allocation4]
    $region9: #{tpu_custom_call.1} parent=1 // pred_fallthru
      _
    // Predicated region
    $region10: #{tpu_custom_call.1} parent=1 // pred_check
      _
    $region11: #{tpu_custom_call.1} parent=1 // pred_check_branch
      %31 = sbr.rel (0) target = $region13
    $region12: #{tpu_custom_call.1} parent=1 // pred_region
      %s33 = ssub.s32 16, 16
      %34 = vsyncadd [#allocation6], %s33
      %s36 = sshll.u32 [#allocation5], 4
      %s37 = int_to_ptr.vmem [resolvable:$true] %s36
      %39 = dma.hbm_to_vmem [thread:$0]  %s2, 16, %s37, [#allocation6]
    $region13: #{tpu_custom_call.1} parent=1 // pred_fallthru
      _
    // Predicated region
    $region14: #{tpu_custom_call.1} parent=1 // pred_check
      _
    $region15: #{tpu_custom_call.1} parent=1 // pred_check_branch
      %41 = sbr.rel (0) target = $region17
    $region16: #{tpu_custom_call.1} parent=1 // pred_region
      _
    $region17: #{tpu_custom_call.1} parent=1 // pred_fallthru
      _
    // Predicated region
    $region18: #{tpu_custom_call.1} parent=1 // pred_check
      _
    $region19: #{tpu_custom_call.1} parent=1 // pred_check_branch
      %43 = sbr.rel (0) target = $region21
    $region20: #{tpu_custom_call.1} parent=1 // pred_region
      _
    $region21: #{tpu_custom_call.1} parent=1 // pred_fallthru
      _
    // Predicated region
    $region22: #{tpu_custom_call.1} parent=1 // pred_check
      _
    $region23: #{tpu_custom_call.1} parent=1 // pred_check_branch
      %45 = sbr.rel (0) target = $region25
    $region24: #{tpu_custom_call.1} parent=1 // pred_region
      _
    $region25: #{tpu_custom_call.1} parent=1 // pred_fallthru
      _
    // Predicated region
    $region26: #{tpu_custom_call.1} parent=1 // pred_check
      _
    $region27: #{tpu_custom_call.1} parent=1 // pred_check_branch
      %47 = sbr.rel (0) target = $region29
    $region28: #{tpu_custom_call.1} parent=1 // pred_region
      _
    $region29: #{tpu_custom_call.1} parent=1 // pred_fallthru
      _
    // Predicated region
    $region30: #{tpu_custom_call.1} parent=1 // pred_check
      _
    $region31: #{tpu_custom_call.1} parent=1 // pred_check_branch
      %49 = sbr.rel (0) target = $region33
    $region32: #{tpu_custom_call.1} parent=1 // pred_region
      _
    $region33: #{tpu_custom_call.1} parent=1 // pred_fallthru
      _
    // Predicated region
    $region34: #{tpu_custom_call.1} parent=1 // pred_check
      _
    $region35: #{tpu_custom_call.1} parent=1 // pred_check_branch
      %51 = sbr.rel (0) target = $region37
    $region36: #{tpu_custom_call.1} parent=1 // pred_region
      _
    $region37: #{tpu_custom_call.1} parent=1 // pred_fallthru
      _
    // Predicated region
    $region38: #{tpu_custom_call.1} parent=1 // pred_check
      _
    $region39: #{tpu_custom_call.1} parent=1 // pred_check_branch
      %53 = sbr.rel (0) target = $region41
    $region40: #{tpu_custom_call.1} parent=1 // pred_region
      %54 = dma.done [#allocation4], 32
    $region41: #{tpu_custom_call.1} parent=1 // pred_fallthru
      _
    // Predicated region
    $region42: #{tpu_custom_call.1} parent=1 // pred_check
      _
    $region43: #{tpu_custom_call.1} parent=1 // pred_check_branch
      %56 = sbr.rel (0) target = $region45
    $region44: #{tpu_custom_call.1} parent=1 // pred_region
      %57 = dma.done [#allocation6], 16
    $region45: #{tpu_custom_call.1} parent=1 // pred_fallthru
      _
    %v58 = vld [vmem:[%s0] sm:$0xff]
    %v59 = vld [vmem:[%s0 + $0x8] sm:$0xf]
    %v60 = vld [vmem:[#allocation3] sm:$0x1]
    %v61 = vld [vmem:[#allocation3 + $0x1] sm:$0x1]
    %v62 = vlaneseq
    %v63 = vshrl.u32 %v62, 7
    %v64 = vadd.s32 %v63, 8
    %v65 = vlaneseq
    %v66 = vshrl.u32 %v65, 7
    %v67 = vsub.s32 0, %v66
    %v68 = vrot.slane %v60, %v67
    %vm69 = vcmp.eq.s32.totalorder %v63, %v68
    %vm70 = vcmp.eq.s32.totalorder %v64, %v68
    %v71 = vsel %vm69, 1, 0
    %v72 = vsel %vm70, 1, 0
    %v73 = vcvt.s32.f32 %v71
    %v74 = vcvt.s32.f32 %v72
    %v75 = vlaneseq
    %v76 = vshrl.u32 %v75, 7
    %v77 = vsub.s32 0, %v76
    %v78 = vrot.slane %v61, %v77
    %vm79 = vcmp.eq.s32.totalorder %v63, %v78
    %vm80 = vcmp.eq.s32.totalorder %v64, %v78
    %v81 = vsel %vm79, 1, 0
    %v82 = vsel %vm80, 1, 0
    %v83 = vcvt.s32.f32 %v81
    %v84 = vcvt.s32.f32 %v82
    %v85 = vlaneseq
    %v86 = vand.u32 %v85, 127
    %vm87 = vcmp.eq.s32.totalorder %v63, %v86
    %vm88 = vcmp.eq.s32.totalorder %v64, %v86
    %v89 = vsel %vm87, 1, 0
    %v90 = vsel %vm88, 1, 0
    %v91 = vcvt.s32.f32 %v89
    %v92 = vcvt.s32.f32 %v90
    %vm93 = vcmask 228352
    %v95 = vsel %vm93, %v83, 0
    %v98 = vsel %vm93, %v84, 0
    %v101 = vsel %vm93, %v73, 0
    %v104 = vsel %vm93, %v74, 0
    %106 = vmatprep.subr.mxu0 0.0
    %107 = vmatpush1.xpose.msra.mxu0 %v101
    %108 = vmatprep.subr.mxu0 0.0
    %109 = vmatpush1.xpose.msra.mxu0 %v104
    %110 = vmatprep.subr.mxu0 0.0
    %111 = vmatpush1.xpose.msra.mxu0 0.0
    %112 = vmatprep.subr.mxu0 0.0
    %113 = vmatpush1.xpose.msra.mxu0 0.0
    %114 = vmatprep.subr.mxu0 0.0
    %115 = vmatpush1.xpose.msra.mxu0 0.0
    %116 = vmatprep.subr.mxu0 0.0
    %117 = vmatpush1.xpose.msra.mxu0 0.0
    %118 = vmatprep.subr.mxu0 0.0
    %119 = vmatpush1.xpose.msra.mxu0 0.0
    %120 = vmatprep.subr.mxu0 0.0
    %121 = vmatpush1.xpose.msra.mxu0 0.0
    %122 = vmatprep.subr.mxu0 0.0
    %123 = vmatpush1.xpose.msra.mxu0 0.0
    %124 = vmatprep.subr.mxu0 0.0
    %125 = vmatpush1.xpose.msra.mxu0 0.0
    %126 = vmatprep.subr.mxu0 0.0
    %127 = vmatpush1.xpose.msra.mxu0 0.0
    %128 = vmatprep.subr.mxu0 0.0
    %129 = vmatpush1.xpose.msra.mxu0 0.0
    %130 = vmatprep.subr.mxu0 0.0
    %131 = vmatpush1.xpose.msra.mxu0 0.0
    %132 = vmatprep.subr.mxu0 0.0
    %133 = vmatpush1.xpose.msra.mxu0 0.0
    %134 = vmatprep.subr.mxu0 0.0
    %135 = vmatpush1.xpose.msra.mxu0 0.0
    %136 = vmatprep.subr.mxu0 0.0
    %137 = vmatpush1.xpose.msra.mxu0 0.0
    %138 = vmatprep.subr.mxu0 0.0
    %139 = vmatpush1.xpose.msra.mxu0 0.0
    %140 = vmatprep.subr.mxu0 0.0
    %141 = vmatpush1.xpose.msra.mxu0 0.0
    %142 = vmatprep.subr.mxu0 0.0
    %143 = vmatpush1.xpose.msra.mxu0 0.0
    %144 = vmatprep.subr.mxu0 0.0
    %145 = vmatpush1.xpose.msra.mxu0 0.0
    %146 = vmatprep.subr.mxu0 0.0
    %147 = vmatpush1.xpose.msra.mxu0 0.0
    %148 = vmatprep.subr.mxu0 0.0
    %149 = vmatpush1.xpose.msra.mxu0 0.0
    %150 = vmatprep.subr.mxu0 0.0
    %151 = vmatpush1.xpose.msra.mxu0 0.0
    %152 = vmatprep.subr.mxu0 0.0
    %153 = vmatpush1.xpose.msra.mxu0 0.0
    %154 = vmatprep.subr.mxu0 0.0
    %155 = vmatpush1.xpose.msra.mxu0 0.0
    %156 = vmatprep.subr.mxu0 0.0
    %157 = vmatpush1.xpose.msra.mxu0 0.0
    %158 = vmatprep.subr.mxu0 0.0
    %159 = vmatpush1.xpose.msra.mxu0 0.0
    %160 = vmatprep.subr.mxu0 0.0
    %161 = vmatpush1.xpose.msra.mxu0 0.0
    %162 = vmatprep.subr.mxu0 0.0
    %163 = vmatpush1.xpose.msra.mxu0 0.0
    %164 = vmatprep.subr.mxu0 0.0
    %165 = vmatpush1.xpose.msra.mxu0 0.0
    %166 = vmatprep.subr.mxu0 0.0
    %167 = vmatpush1.xpose.msra.mxu0 0.0
    %168 = vmatprep.subr.mxu0 0.0
    %169 = vmatpush1.xpose.msra.mxu0 0.0
    %170 = vmatprep.mubr.f32.mxu0 0.0
    %171 = vmatmul.mubr.f32.gmra.mrb[0].mxu0 %v95
    %v172 = vpop.f32.mrb[0].mxu0
    %v173 = vadd.f32 %v91, %v172
    %v174 = vpop.f32.mrb[0].mxu0
    %175 = vmatprep.mubr.f32.mxu0 0.0
    %176 = vmatmul.mubr.f32.gmra.mrb[0].mxu0 %v98
    %v177 = vpop.f32.mrb[0].mxu0
    %v178 = vadd.f32 %v92, %v177
    %v179 = vpop.f32.mrb[0].mxu0
    %180 = vdwg.mxu0
    %vm181 = vcmask 97280
    %v182 = vsel %vm181, %v173, 0.0
    %183 = vadd.xlane.f32.xlu0 %v182
    %v184 = vpop.xlane.xlu0 %183
    %vm185 = vcmask 93184
    %v186 = vsel %vm185, %v178, 0.0
    %187 = vadd.xlane.f32.xlu0 %v186
    %v188 = vpop.xlane.xlu0 %187
    %v189 = vrsqrt.pop %v184
    %v190 = vmul.f32 %v184, %v189
    %vm191 = vcmp.eq.f32.partialorder %v184, inf
    %v192 = vsel %vm191, %v184, %v190
    %vm193 = vcmp.eq.f32.partialorder %v184, 0.0
    %v194 = vand.u32 %v184, 2147483648
    %v195 = vsel %vm193, %v194, %v192
    %v196 = vrsqrt.pop %v188
    %v197 = vmul.f32 %v188, %v196
    %vm198 = vcmp.eq.f32.partialorder %v188, inf
    %v199 = vsel %vm198, %v188, %v197
    %vm200 = vcmp.eq.f32.partialorder %v188, 0.0
    %v201 = vand.u32 %v188, 2147483648
    %v202 = vsel %vm200, %v201, %v199
    %v203 = vrcp.pop %v195
    %v204 = vmul.f32 1.0, %v203
    %v205 = vrcp.pop %v202
    %v206 = vmul.f32 1.0, %v205
    %v207 = vld [vmem:[%s3] sm:$0xff]
    %v208 = vld [vmem:[%s3 + $0x8] sm:$0xff]
    %vm209 = vcmask 130048
    %v211 = vsel %vm209, %v58, 0
    %v214 = vsel %vm209, %v59, 0
    %216 = vmatprep.subr.mxu0 0.0
    %217 = vmatpush1.msra.mxu0 %v207
    %218 = vmatprep.subr.mxu0 0.0
    %219 = vmatpush1.msra.mxu0 %v208
    %220 = vmatprep.subr.mxu0 0.0
    %221 = vmatpush1.msra.mxu0 0.0
    %222 = vmatprep.subr.mxu0 0.0
    %223 = vmatpush1.msra.mxu0 0.0
    %224 = vmatprep.subr.mxu0 0.0
    %225 = vmatpush1.msra.mxu0 0.0
    %226 = vmatprep.subr.mxu0 0.0
    %227 = vmatpush1.msra.mxu0 0.0
    %228 = vmatprep.subr.mxu0 0.0
    %229 = vmatpush1.msra.mxu0 0.0
    %230 = vmatprep.subr.mxu0 0.0
    %231 = vmatpush1.msra.mxu0 0.0
    %232 = vmatprep.subr.mxu0 0.0
    %233 = vmatpush1.msra.mxu0 0.0
    %234 = vmatprep.subr.mxu0 0.0
    %235 = vmatpush1.msra.mxu0 0.0
    %236 = vmatprep.subr.mxu0 0.0
    %237 = vmatpush1.msra.mxu0 0.0
    %238 = vmatprep.subr.mxu0 0.0
    %239 = vmatpush1.msra.mxu0 0.0
    %240 = vmatprep.subr.mxu0 0.0
    %241 = vmatpush1.msra.mxu0 0.0
    %242 = vmatprep.subr.mxu0 0.0
    %243 = vmatpush1.msra.mxu0 0.0
    %244 = vmatprep.subr.mxu0 0.0
    %245 = vmatpush1.msra.mxu0 0.0
    %246 = vmatprep.subr.mxu0 0.0
    %247 = vmatpush1.msra.mxu0 0.0
    %248 = vmatprep.subr.mxu0 0.0
    %249 = vmatpush1.msra.mxu0 0.0
    %250 = vmatprep.subr.mxu0 0.0
    %251 = vmatpush1.msra.mxu0 0.0
    %252 = vmatprep.subr.mxu0 0.0
    %253 = vmatpush1.msra.mxu0 0.0
    %254 = vmatprep.subr.mxu0 0.0
    %255 = vmatpush1.msra.mxu0 0.0
    %256 = vmatprep.subr.mxu0 0.0
    %257 = vmatpush1.msra.mxu0 0.0
    %258 = vmatprep.subr.mxu0 0.0
    %259 = vmatpush1.msra.mxu0 0.0
    %260 = vmatprep.subr.mxu0 0.0
    %261 = vmatpush1.msra.mxu0 0.0
    %262 = vmatprep.subr.mxu0 0.0
    %263 = vmatpush1.msra.mxu0 0.0
    %264 = vmatprep.subr.mxu0 0.0
    %265 = vmatpush1.msra.mxu0 0.0
    %266 = vmatprep.subr.mxu0 0.0
    %267 = vmatpush1.msra.mxu0 0.0
    %268 = vmatprep.subr.mxu0 0.0
    %269 = vmatpush1.msra.mxu0 0.0
    %270 = vmatprep.subr.mxu0 0.0
    %271 = vmatpush1.msra.mxu0 0.0
    %272 = vmatprep.subr.mxu0 0.0
    %273 = vmatpush1.msra.mxu0 0.0
    %274 = vmatprep.subr.mxu0 0.0
    %275 = vmatpush1.msra.mxu0 0.0
    %276 = vmatprep.subr.mxu0 0.0
    %277 = vmatpush1.msra.mxu0 0.0
    %278 = vmatprep.subr.mxu0 0.0
    %279 = vmatpush1.msra.mxu0 0.0
    %280 = vmatprep.mubr.f32.mxu0 0.0
    %281 = vmatmul.mubr.f32.gmra.mrb[0].mxu0 %v211
    %v282 = vpop.f32.mrb[0].mxu0
    %v283 = vadd.f32 0.0, %v282
    %v284 = vpop.f32.mrb[0].mxu0
    %285 = vmatprep.mubr.f32.mxu0 0.0
    %286 = vmatmul.mubr.f32.gmra.mrb[0].mxu0 %v214
    %v287 = vpop.f32.mrb[0].mxu0
    %v288 = vadd.f32 0.0, %v287
    %v289 = vpop.f32.mrb[0].mxu0
    %290 = vdwg.mxu0
    %v291 = vmul.f32 %v283, %v204
    %v292 = vmul.f32 %v288, %v206
    %v294 = vsel %vm181, %v173, 0
    %v297 = vsel %vm181, %v178, 0
    %vm299 = vcmask 1043456
    %v301 = vsel %vm299, %v292, 0
    %303 = vmatprep.subr.mxu0 0.0
    %304 = vmatpush1.msra.mxu0 %v291
    %305 = vmatprep.subr.mxu0 0.0
    %306 = vmatpush1.msra.mxu0 %v301
    %307 = vmatprep.subr.mxu0 0.0
    %308 = vmatpush1.msra.mxu0 0.0
    %309 = vmatprep.subr.mxu0 0.0
    %310 = vmatpush1.msra.mxu0 0.0
    %311 = vmatprep.subr.mxu0 0.0
    %312 = vmatpush1.msra.mxu0 0.0
    %313 = vmatprep.subr.mxu0 0.0
    %314 = vmatpush1.msra.mxu0 0.0
    %315 = vmatprep.subr.mxu0 0.0
    %316 = vmatpush1.msra.mxu0 0.0
    %317 = vmatprep.subr.mxu0 0.0
    %318 = vmatpush1.msra.mxu0 0.0
    %319 = vmatprep.subr.mxu0 0.0
    %320 = vmatpush1.msra.mxu0 0.0
    %321 = vmatprep.subr.mxu0 0.0
    %322 = vmatpush1.msra.mxu0 0.0
    %323 = vmatprep.subr.mxu0 0.0
    %324 = vmatpush1.msra.mxu0 0.0
    %325 = vmatprep.subr.mxu0 0.0
    %326 = vmatpush1.msra.mxu0 0.0
    %327 = vmatprep.subr.mxu0 0.0
    %328 = vmatpush1.msra.mxu0 0.0
    %329 = vmatprep.subr.mxu0 0.0
    %330 = vmatpush1.msra.mxu0 0.0
    %331 = vmatprep.subr.mxu0 0.0
    %332 = vmatpush1.msra.mxu0 0.0
    %333 = vmatprep.subr.mxu0 0.0
    %334 = vmatpush1.msra.mxu0 0.0
    %335 = vmatprep.subr.mxu0 0.0
    %336 = vmatpush1.msra.mxu0 0.0
    %337 = vmatprep.subr.mxu0 0.0
    %338 = vmatpush1.msra.mxu0 0.0
    %339 = vmatprep.subr.mxu0 0.0
    %340 = vmatpush1.msra.mxu0 0.0
    %341 = vmatprep.subr.mxu0 0.0
    %342 = vmatpush1.msra.mxu0 0.0
    %343 = vmatprep.subr.mxu0 0.0
    %344 = vmatpush1.msra.mxu0 0.0
    %345 = vmatprep.subr.mxu0 0.0
    %346 = vmatpush1.msra.mxu0 0.0
    %347 = vmatprep.subr.mxu0 0.0
    %348 = vmatpush1.msra.mxu0 0.0
    %349 = vmatprep.subr.mxu0 0.0
    %350 = vmatpush1.msra.mxu0 0.0
    %351 = vmatprep.subr.mxu0 0.0
    %352 = vmatpush1.msra.mxu0 0.0
    %353 = vmatprep.subr.mxu0 0.0
    %354 = vmatpush1.msra.mxu0 0.0
    %355 = vmatprep.subr.mxu0 0.0
    %356 = vmatpush1.msra.mxu0 0.0
    %357 = vmatprep.subr.mxu0 0.0
    %358 = vmatpush1.msra.mxu0 0.0
    %359 = vmatprep.subr.mxu0 0.0
    %360 = vmatpush1.msra.mxu0 0.0
    %361 = vmatprep.subr.mxu0 0.0
    %362 = vmatpush1.msra.mxu0 0.0
    %363 = vmatprep.subr.mxu0 0.0
    %364 = vmatpush1.msra.mxu0 0.0
    %365 = vmatprep.subr.mxu0 0.0
    %366 = vmatpush1.msra.mxu0 0.0
    %367 = vmatprep.mubr.f32.mxu0 0.0
    %368 = vmatmul.mubr.f32.gmra.mrb[0].mxu0 %v294
    %v369 = vpop.f32.mrb[0].mxu0
    %v370 = vadd.f32 0.0, %v369
    %v371 = vpop.f32.mrb[0].mxu0
    %372 = vmatprep.mubr.f32.mxu0 0.0
    %373 = vmatmul.mubr.f32.gmra.mrb[0].mxu0 %v297
    %v374 = vpop.f32.mrb[0].mxu0
    %v375 = vadd.f32 0.0, %v374
    %v376 = vpop.f32.mrb[0].mxu0
    %377 = vdwg.mxu0
    %v378 = vmul.f32 %v370, %v204
    %v379 = vmul.f32 %v375, %v206
    %v380 = vld [vmem:[%s4] sm:$0x1]
    %v382 = vlaneseq
    %v383 = vshrl.u32 %v382, 7
    %v384 = vsub.s32 0, %v383
    %v385 = vrot.slane %v380, %v384
    %v387 = vadd.f32 %v378, %v385
    %v388 = vadd.f32 %v379, %v385
    %v389 = vmax.f32 %v387, 0.0
    %v390 = vmax.f32 %v388, 0.0
    %v391 = vld [vmem:[%s5] sm:$0xff]
    %v392 = vld [vmem:[%s5 + $0x8] sm:$0xff]
    %v394 = vsel %vm209, %v389, 0
    %v397 = vsel %vm209, %v390, 0
    %399 = vmatprep.subr.mxu0 0.0
    %400 = vmatpush1.msra.mxu0 %v391
    %401 = vmatprep.subr.mxu0 0.0
    %402 = vmatpush1.msra.mxu0 %v392
    %403 = vmatprep.subr.mxu0 0.0
    %404 = vmatpush1.msra.mxu0 0.0
    %405 = vmatprep.subr.mxu0 0.0
    %406 = vmatpush1.msra.mxu0 0.0
    %407 = vmatprep.subr.mxu0 0.0
    %408 = vmatpush1.msra.mxu0 0.0
    %409 = vmatprep.subr.mxu0 0.0
    %410 = vmatpush1.msra.mxu0 0.0
    %411 = vmatprep.subr.mxu0 0.0
    %412 = vmatpush1.msra.mxu0 0.0
    %413 = vmatprep.subr.mxu0 0.0
    %414 = vmatpush1.msra.mxu0 0.0
    %415 = vmatprep.subr.mxu0 0.0
    %416 = vmatpush1.msra.mxu0 0.0
    %417 = vmatprep.subr.mxu0 0.0
    %418 = vmatpush1.msra.mxu0 0.0
    %419 = vmatprep.subr.mxu0 0.0
    %420 = vmatpush1.msra.mxu0 0.0
    %421 = vmatprep.subr.mxu0 0.0
    %422 = vmatpush1.msra.mxu0 0.0
    %423 = vmatprep.subr.mxu0 0.0
    %424 = vmatpush1.msra.mxu0 0.0
    %425 = vmatprep.subr.mxu0 0.0
    %426 = vmatpush1.msra.mxu0 0.0
    %427 = vmatprep.subr.mxu0 0.0
    %428 = vmatpush1.msra.mxu0 0.0
    %429 = vmatprep.subr.mxu0 0.0
    %430 = vmatpush1.msra.mxu0 0.0
    %431 = vmatprep.subr.mxu0 0.0
    %432 = vmatpush1.msra.mxu0 0.0
    %433 = vmatprep.subr.mxu0 0.0
    %434 = vmatpush1.msra.mxu0 0.0
    %435 = vmatprep.subr.mxu0 0.0
    %436 = vmatpush1.msra.mxu0 0.0
    %437 = vmatprep.subr.mxu0 0.0
    %438 = vmatpush1.msra.mxu0 0.0
    %439 = vmatprep.subr.mxu0 0.0
    %440 = vmatpush1.msra.mxu0 0.0
    %441 = vmatprep.subr.mxu0 0.0
    %442 = vmatpush1.msra.mxu0 0.0
    %443 = vmatprep.subr.mxu0 0.0
    %444 = vmatpush1.msra.mxu0 0.0
    %445 = vmatprep.subr.mxu0 0.0
    %446 = vmatpush1.msra.mxu0 0.0
    %447 = vmatprep.subr.mxu0 0.0
    %448 = vmatpush1.msra.mxu0 0.0
    %449 = vmatprep.subr.mxu0 0.0
    %450 = vmatpush1.msra.mxu0 0.0
    %451 = vmatprep.subr.mxu0 0.0
    %452 = vmatpush1.msra.mxu0 0.0
    %453 = vmatprep.subr.mxu0 0.0
    %454 = vmatpush1.msra.mxu0 0.0
    %455 = vmatprep.subr.mxu0 0.0
    %456 = vmatpush1.msra.mxu0 0.0
    %457 = vmatprep.subr.mxu0 0.0
    %458 = vmatpush1.msra.mxu0 0.0
    %459 = vmatprep.subr.mxu0 0.0
    %460 = vmatpush1.msra.mxu0 0.0
    %461 = vmatprep.subr.mxu0 0.0
    %462 = vmatpush1.msra.mxu0 0.0
    %463 = vmatprep.mubr.f32.mxu0 0.0
    %464 = vmatmul.mubr.f32.gmra.mrb[0].mxu0 %v394
    %v465 = vpop.f32.mrb[0].mxu0
    %v466 = vadd.f32 0.0, %v465
    %v467 = vpop.f32.mrb[0].mxu0
    %468 = vmatprep.mubr.f32.mxu0 0.0
    %469 = vmatmul.mubr.f32.gmra.mrb[0].mxu0 %v397
    %v470 = vpop.f32.mrb[0].mxu0
    %v471 = vadd.f32 0.0, %v470
    %v472 = vpop.f32.mrb[0].mxu0
    %473 = vdwg.mxu0
    %v474 = vmul.f32 %v466, %v204
    %v475 = vmul.f32 %v471, %v206
    %v477 = vsel %vm299, %v475, 0
    %479 = vmatprep.subr.mxu0 0.0
    %480 = vmatpush1.msra.mxu0 %v474
    %481 = vmatprep.subr.mxu0 0.0
    %482 = vmatpush1.msra.mxu0 %v477
    %483 = vmatprep.subr.mxu0 0.0
    %484 = vmatpush1.msra.mxu0 0.0
    %485 = vmatprep.subr.mxu0 0.0
    %486 = vmatpush1.msra.mxu0 0.0
    %487 = vmatprep.subr.mxu0 0.0
    %488 = vmatpush1.msra.mxu0 0.0
    %489 = vmatprep.subr.mxu0 0.0
    %490 = vmatpush1.msra.mxu0 0.0
    %491 = vmatprep.subr.mxu0 0.0
    %492 = vmatpush1.msra.mxu0 0.0
    %493 = vmatprep.subr.mxu0 0.0
    %494 = vmatpush1.msra.mxu0 0.0
    %495 = vmatprep.subr.mxu0 0.0
    %496 = vmatpush1.msra.mxu0 0.0
    %497 = vmatprep.subr.mxu0 0.0
    %498 = vmatpush1.msra.mxu0 0.0
    %499 = vmatprep.subr.mxu0 0.0
    %500 = vmatpush1.msra.mxu0 0.0
    %501 = vmatprep.subr.mxu0 0.0
    %502 = vmatpush1.msra.mxu0 0.0
    %503 = vmatprep.subr.mxu0 0.0
    %504 = vmatpush1.msra.mxu0 0.0
    %505 = vmatprep.subr.mxu0 0.0
    %506 = vmatpush1.msra.mxu0 0.0
    %507 = vmatprep.subr.mxu0 0.0
    %508 = vmatpush1.msra.mxu0 0.0
    %509 = vmatprep.subr.mxu0 0.0
    %510 = vmatpush1.msra.mxu0 0.0
    %511 = vmatprep.subr.mxu0 0.0
    %512 = vmatpush1.msra.mxu0 0.0
    %513 = vmatprep.subr.mxu0 0.0
    %514 = vmatpush1.msra.mxu0 0.0
    %515 = vmatprep.subr.mxu0 0.0
    %516 = vmatpush1.msra.mxu0 0.0
    %517 = vmatprep.subr.mxu0 0.0
    %518 = vmatpush1.msra.mxu0 0.0
    %519 = vmatprep.subr.mxu0 0.0
    %520 = vmatpush1.msra.mxu0 0.0
    %521 = vmatprep.subr.mxu0 0.0
    %522 = vmatpush1.msra.mxu0 0.0
    %523 = vmatprep.subr.mxu0 0.0
    %524 = vmatpush1.msra.mxu0 0.0
    %525 = vmatprep.subr.mxu0 0.0
    %526 = vmatpush1.msra.mxu0 0.0
    %527 = vmatprep.subr.mxu0 0.0
    %528 = vmatpush1.msra.mxu0 0.0
    %529 = vmatprep.subr.mxu0 0.0
    %530 = vmatpush1.msra.mxu0 0.0
    %531 = vmatprep.subr.mxu0 0.0
    %532 = vmatpush1.msra.mxu0 0.0
    %533 = vmatprep.subr.mxu0 0.0
    %534 = vmatpush1.msra.mxu0 0.0
    %535 = vmatprep.subr.mxu0 0.0
    %536 = vmatpush1.msra.mxu0 0.0
    %537 = vmatprep.subr.mxu0 0.0
    %538 = vmatpush1.msra.mxu0 0.0
    %539 = vmatprep.subr.mxu0 0.0
    %540 = vmatpush1.msra.mxu0 0.0
    %541 = vmatprep.subr.mxu0 0.0
    %542 = vmatpush1.msra.mxu0 0.0
    %543 = vmatprep.mubr.f32.mxu0 0.0
    %544 = vmatmul.mubr.f32.gmra.mrb[0].mxu0 %v294
    %v545 = vpop.f32.mrb[0].mxu0
    %v546 = vadd.f32 0.0, %v545
    %v547 = vpop.f32.mrb[0].mxu0
    %548 = vmatprep.mubr.f32.mxu0 0.0
    %549 = vmatmul.mubr.f32.gmra.mrb[0].mxu0 %v297
    %v550 = vpop.f32.mrb[0].mxu0
    %v551 = vadd.f32 0.0, %v550
    %v552 = vpop.f32.mrb[0].mxu0
    %553 = vdwg.mxu0
    %v554 = vmul.f32 %v546, %v204
    %v555 = vmul.f32 %v551, %v206
    %v556 = vld [vmem:[%s6] sm:$0x1]
    %v558 = vlaneseq
    %v559 = vshrl.u32 %v558, 7
    %v560 = vsub.s32 0, %v559
    %v561 = vrot.slane %v556, %v560
    %v563 = vadd.f32 %v554, %v561
    %v564 = vadd.f32 %v555, %v561
    %v565 = vmax.f32 %v563, 0.0
    %v566 = vmax.f32 %v564, 0.0
    %v567 = vld [vmem:[#allocation5] sm:$0x1]
    %v568 = vlaneseq
    %v569 = vshrl.u32 %v568, 7
    %v570 = vsub.s32 0, %v569
    %v571 = vrot.slane %v567, %v570
    %vm572 = vcmp.eq.s32.totalorder %v63, %v571
    %v573 = vsel %vm572, 1, 0
    %v574 = vcvt.s32.f32 %v573
    %vm575 = vcmask 91136
    %v576 = vsel %vm575, %v574, 0.0
    %577 = vadd.xlane.f32.xlu0 %v576
    %v578 = vpop.xlane.xlu0 %577
    %v579 = vmax.f32 %v578, 1.0
    %v581 = vsel %vm181, %v574, 0
    %v584 = vsel %vm299, %v566, 0
    %586 = vmatprep.subr.mxu0 0.0
    %587 = vmatpush1.msra.mxu0 %v565
    %588 = vmatprep.subr.mxu0 0.0
    %589 = vmatpush1.msra.mxu0 %v584
    %590 = vmatprep.subr.mxu0 0.0
    %591 = vmatpush1.msra.mxu0 0.0
    %592 = vmatprep.subr.mxu0 0.0
    %593 = vmatpush1.msra.mxu0 0.0
    %594 = vmatprep.subr.mxu0 0.0
    %595 = vmatpush1.msra.mxu0 0.0
    %596 = vmatprep.subr.mxu0 0.0
    %597 = vmatpush1.msra.mxu0 0.0
    %598 = vmatprep.subr.mxu0 0.0
    %599 = vmatpush1.msra.mxu0 0.0
    %600 = vmatprep.subr.mxu0 0.0
    %601 = vmatpush1.msra.mxu0 0.0
    %602 = vmatprep.subr.mxu0 0.0
    %603 = vmatpush1.msra.mxu0 0.0
    %604 = vmatprep.subr.mxu0 0.0
    %605 = vmatpush1.msra.mxu0 0.0
    %606 = vmatprep.subr.mxu0 0.0
    %607 = vmatpush1.msra.mxu0 0.0
    %608 = vmatprep.subr.mxu0 0.0
    %609 = vmatpush1.msra.mxu0 0.0
    %610 = vmatprep.subr.mxu0 0.0
    %611 = vmatpush1.msra.mxu0 0.0
    %612 = vmatprep.subr.mxu0 0.0
    %613 = vmatpush1.msra.mxu0 0.0
    %614 = vmatprep.subr.mxu0 0.0
    %615 = vmatpush1.msra.mxu0 0.0
    %616 = vmatprep.subr.mxu0 0.0
    %617 = vmatpush1.msra.mxu0 0.0
    %618 = vmatprep.subr.mxu0 0.0
    %619 = vmatpush1.msra.mxu0 0.0
    %620 = vmatprep.subr.mxu0 0.0
    %621 = vmatpush1.msra.mxu0 0.0
    %622 = vmatprep.subr.mxu0 0.0
    %623 = vmatpush1.msra.mxu0 0.0
    %624 = vmatprep.subr.mxu0 0.0
    %625 = vmatpush1.msra.mxu0 0.0
    %626 = vmatprep.subr.mxu0 0.0
    %627 = vmatpush1.msra.mxu0 0.0
    %628 = vmatprep.subr.mxu0 0.0
    %629 = vmatpush1.msra.mxu0 0.0
    %630 = vmatprep.subr.mxu0 0.0
    %631 = vmatpush1.msra.mxu0 0.0
    %632 = vmatprep.subr.mxu0 0.0
    %633 = vmatpush1.msra.mxu0 0.0
    %634 = vmatprep.subr.mxu0 0.0
    %635 = vmatpush1.msra.mxu0 0.0
    %636 = vmatprep.subr.mxu0 0.0
    %637 = vmatpush1.msra.mxu0 0.0
    %638 = vmatprep.subr.mxu0 0.0
    %639 = vmatpush1.msra.mxu0 0.0
    %640 = vmatprep.subr.mxu0 0.0
    %641 = vmatpush1.msra.mxu0 0.0
    %642 = vmatprep.subr.mxu0 0.0
    %643 = vmatpush1.msra.mxu0 0.0
    %644 = vmatprep.subr.mxu0 0.0
    %645 = vmatpush1.msra.mxu0 0.0
    %646 = vmatprep.subr.mxu0 0.0
    %647 = vmatpush1.msra.mxu0 0.0
    %648 = vmatprep.subr.mxu0 0.0
    %649 = vmatpush1.msra.mxu0 0.0
    %650 = vmatprep.mubr.f32.mxu0 0.0
    %651 = vmatmul.mubr.f32.gmra.mrb[0].mxu0 %v581
    %v652 = vpop.f32.mrb[0].mxu0
    %v653 = vadd.f32 0.0, %v652
    %v654 = vpop.f32.mrb[0].mxu0
    %655 = vdwg.mxu0
    %v656 = vrcp.pop %v579
    %v657 = vmul.f32 %v653, %v656
    %v658 = vld [vmem:[%s7] sm:$0xff]
    %v659 = vld [vmem:[%s7 + $0x8] sm:$0xff]
    %v660 = vld [vmem:[%s7 + $0x10] sm:$0xff]
    %v661 = vld [vmem:[%s7 + $0x18] sm:$0xff]
    %v662 = vld [vmem:[#allocation2] sm:$0x1]
    %v664 = vlaneseq
    %v665 = vshrl.u32 %v664, 7
    %v666 = vsub.s32 0, %v665
    %v667 = vrot.slane %v662, %v666
    %vm669 = vcmask 261120
    %v671 = vsel %vm669, %v657, 0
    %673 = vmatprep.subr.mxu0 0.0
    %674 = vmatpush1.msra.mxu0 %v658
    %675 = vmatprep.subr.mxu0 0.0
    %676 = vmatpush1.msra.mxu0 %v659
    %677 = vmatprep.subr.mxu0 0.0
    %678 = vmatpush1.msra.mxu0 %v660
    %679 = vmatprep.subr.mxu0 0.0
    %680 = vmatpush1.msra.mxu0 %v661
    %681 = vmatprep.subr.mxu0 0.0
    %682 = vmatpush1.msra.mxu0 0.0
    %683 = vmatprep.subr.mxu0 0.0
    %684 = vmatpush1.msra.mxu0 0.0
    %685 = vmatprep.subr.mxu0 0.0
    %686 = vmatpush1.msra.mxu0 0.0
    %687 = vmatprep.subr.mxu0 0.0
    %688 = vmatpush1.msra.mxu0 0.0
    %689 = vmatprep.subr.mxu0 0.0
    %690 = vmatpush1.msra.mxu0 0.0
    %691 = vmatprep.subr.mxu0 0.0
    %692 = vmatpush1.msra.mxu0 0.0
    %693 = vmatprep.subr.mxu0 0.0
    %694 = vmatpush1.msra.mxu0 0.0
    %695 = vmatprep.subr.mxu0 0.0
    %696 = vmatpush1.msra.mxu0 0.0
    %697 = vmatprep.subr.mxu0 0.0
    %698 = vmatpush1.msra.mxu0 0.0
    %699 = vmatprep.subr.mxu0 0.0
    %700 = vmatpush1.msra.mxu0 0.0
    %701 = vmatprep.subr.mxu0 0.0
    %702 = vmatpush1.msra.mxu0 0.0
    %703 = vmatprep.subr.mxu0 0.0
    %704 = vmatpush1.msra.mxu0 0.0
    %705 = vmatprep.subr.mxu0 0.0
    %706 = vmatpush1.msra.mxu0 0.0
    %707 = vmatprep.subr.mxu0 0.0
    %708 = vmatpush1.msra.mxu0 0.0
    %709 = vmatprep.subr.mxu0 0.0
    %710 = vmatpush1.msra.mxu0 0.0
    %711 = vmatprep.subr.mxu0 0.0
    %712 = vmatpush1.msra.mxu0 0.0
    %713 = vmatprep.subr.mxu0 0.0
    %714 = vmatpush1.msra.mxu0 0.0
    %715 = vmatprep.subr.mxu0 0.0
    %716 = vmatpush1.msra.mxu0 0.0
    %717 = vmatprep.subr.mxu0 0.0
    %718 = vmatpush1.msra.mxu0 0.0
    %719 = vmatprep.subr.mxu0 0.0
    %720 = vmatpush1.msra.mxu0 0.0
    %721 = vmatprep.subr.mxu0 0.0
    %722 = vmatpush1.msra.mxu0 0.0
    %723 = vmatprep.subr.mxu0 0.0
    %724 = vmatpush1.msra.mxu0 0.0
    %725 = vmatprep.subr.mxu0 0.0
    %726 = vmatpush1.msra.mxu0 0.0
    %727 = vmatprep.subr.mxu0 0.0
    %728 = vmatpush1.msra.mxu0 0.0
    %729 = vmatprep.subr.mxu0 0.0
    %730 = vmatpush1.msra.mxu0 0.0
    %731 = vmatprep.subr.mxu0 0.0
    %732 = vmatpush1.msra.mxu0 0.0
    %733 = vmatprep.subr.mxu0 0.0
    %734 = vmatpush1.msra.mxu0 0.0
    %735 = vmatprep.subr.mxu0 0.0
    %736 = vmatpush1.msra.mxu0 0.0
    %737 = vmatprep.mubr.f32.mxu0 0.0
    %738 = vmatmul.mubr.f32.gmra.mrb[0].mxu0 %v671
    %v739 = vpop.f32.mrb[0].mxu0
    %v740 = vadd.f32 %v667, %v739
    %v741 = vpop.f32.mrb[0].mxu0
    %742 = vdwg.mxu0
    %vm743 = vcmask 1024
    %744 = vst.msk [vmem:[%s9] sm:$0x3] %vm743, %v740
    // Predicated region
    $region46: #{tpu_custom_call.1} parent=1 // pred_check
      _
    $region47: #{tpu_custom_call.1} parent=1 // pred_check_branch
      %746 = sbr.rel (0) target = $region49
    $region48: #{tpu_custom_call.1} parent=1 // pred_region
      _
    $region49: #{tpu_custom_call.1} parent=1 // pred_fallthru
      _
    // Predicated region
    $region50: #{tpu_custom_call.1} parent=1 // pred_check
      _
    $region51: #{tpu_custom_call.1} parent=1 // pred_check_branch
      %748 = sbr.rel (0) target = $region53
    $region52: #{tpu_custom_call.1} parent=1 // pred_region
      _
    $region53: #{tpu_custom_call.1} parent=1 // pred_fallthru
      _
    %749 = vsyncpa [#allocation4], 1
    %750 = vsyncpa [#allocation6], 1

</llo_original>
